<compile_context>
chip_gen: v7x
topology: tpu7x:2x2x1
jax: 0.10.0
libtpu: 0.0.40
codegen_flags: <defaults>
</compile_context>

<pallas_src>
import functools

import jax
import jax.numpy as jnp
from jax import lax
from jax.experimental import pallas as pl
from jax.experimental.pallas import tpu as pltpu


def _wordkvmn_kernel(h_ref, ea_ref, lab_ref, m_ref, ect_ref, o_ref,
                     *, temper, num_labels):
    # Block shapes:
    #   h   (1, tL, H)    ea  (1, W, H)    lab (1, tL, W) int32
    #   m   (1, tL, W)    ect (C, H)       o   (1, tL, H)
    h = h_ref[0]                                    # (tL, H)
    ea = ea_ref[0]                                  # (W, H)
    lab = lab_ref[0]                                # (tL, W) int32
    m = jnp.clip(m_ref[0], 0.0, 1.0)                # (tL, W)
    ect = ect_ref[...]                              # (C, H)

    # u = hidden @ emb_a^T / temper : contract H on both operands (no ea.T
    # relayout), result (tL, W) on the MXU with f32 accumulation.
    u = lax.dot_general(h, ea,
                        dimension_numbers=(((1,), (1,)), ((), ())),
                        preferred_element_type=jnp.float32) / temper

    # Masked softmax-style normalization over the word (W) axis.
    delta = jnp.exp(u) * m                                    # (tL, W)
    denom = jnp.sum(delta, axis=1, keepdims=True) + 1e-10     # (tL, 1)
    p = delta * pl.reciprocal(denom, approx=False)            # (tL, W)

    # Aggregate p per label id:
    #   agg[l, c] = sum_{w : lab[l, w] == c} p[l, w]          (tL, C)
    # C = 10 (fixed by the module), so a static unrolled loop of masked
    # row-sums is cheap; the heavy (tL x C) x (C x H) work goes to the MXU.
    iota_c = lax.broadcasted_iota(jnp.int32, (1, num_labels), 1)   # (1, C)
    agg = jnp.zeros((h.shape[0], num_labels), dtype=jnp.float32)
    for c in range(num_labels):
        wc = jnp.sum(jnp.where(lab == c, p, 0.0), axis=1, keepdims=True)  # (tL,1)
        agg = agg + jnp.where(iota_c == c, wc, 0.0)                       # (tL,C)

    # o = agg @ emb_c_table + hidden  (small MXU matmul, K = C = 10)
    o = jnp.dot(agg, ect, preferred_element_type=jnp.float32)  # (tL, H)
    o_ref[0] = (o + h).astype(o_ref.dtype)


def wordkvmn_forward(word_seq, hidden_state, label_value_matrix,
                     word_mask_metrix, emb_a_table, emb_c_table, *, tl=None):
    """JAX wrapper: tiny emb_a gather in plain JAX, hot path in Pallas."""
    B, L, H = hidden_state.shape
    W = word_seq.shape[1]
    C = emb_c_table.shape[0]            # 10 in the PyTorch module
    temper = float(H) ** 0.5

    # emb_a gather stays in plain JAX — (B, W, H) is small.
    emb_a = jnp.take(emb_a_table, word_seq, axis=0)            # (B, W, H)

    # L-tile: multiple of 8 (sublane), capped so per-step tiles stay small
    # enough for v5e (16 MiB scoped) / v7x (64 MiB physical) VMEM.
    if tl is None:
        tl = 512
    tl = max(8, min(-(-tl // 8) * 8, -(-L // 8) * 8))
    Lp = -(-L // tl) * tl

    h_in, lab_in, m_in = hidden_state, label_value_matrix, word_mask_metrix
    if Lp != L:
        pad = ((0, 0), (0, Lp - L), (0, 0))
        h_in = jnp.pad(h_in, pad)
        lab_in = jnp.pad(lab_in, pad)
        m_in = jnp.pad(m_in, pad)       # zero mask -> padded rows contribute 0

    kernel = functools.partial(_wordkvmn_kernel, temper=temper, num_labels=C)

    out = pl.pallas_call(
        kernel,
        out_shape=jax.ShapeDtypeStruct((B, Lp, H), hidden_state.dtype),
        grid_spec=pltpu.PrefetchScalarGridSpec(
            num_scalar_prefetch=0,
            grid=(B, Lp // tl),
            in_specs=[
                pl.BlockSpec((1, tl, H), lambda b, i: (b, i, 0)),   # hidden
                pl.BlockSpec((1, W, H), lambda b, i: (b, 0, 0)),    # emb_a
                pl.BlockSpec((1, tl, W), lambda b, i: (b, i, 0)),   # labels
                pl.BlockSpec((1, tl, W), lambda b, i: (b, i, 0)),   # mask
                pl.BlockSpec((C, H), lambda b, i: (0, 0)),          # emb_c table
            ],
            out_specs=pl.BlockSpec((1, tl, H), lambda b, i: (b, i, 0)),
        ),
        compiler_params=pltpu.CompilerParams(
            dimension_semantics=("parallel", "parallel")),
    )(h_in, emb_a, lab_in, m_in, emb_c_table)

    return out[:, :L, :]


def wordkvmn_reference(word_seq, hidden_state, label_value_matrix,
                       word_mask_metrix, emb_a_table, emb_c_table):
    """Pure-JAX reference mirroring the PyTorch code line-by-line."""
    H = hidden_state.shape[-1]
    temper = float(H) ** 0.5
    embedding_a = jnp.take(emb_a_table, word_seq, axis=0)            # (B, W, H)
    embedding_c = jnp.take(emb_c_table, label_value_matrix, axis=0)  # (B, L, W, H)
    embedding_a = jnp.transpose(embedding_a, (0, 2, 1))              # (B, H, W)
    u = jnp.matmul(hidden_state, embedding_a) / temper               # (B, L, W)
    tmp_mask = jnp.clip(word_mask_metrix, 0, 1)
    exp_u = jnp.exp(u)
    delta = exp_u * tmp_mask
    s = jnp.sum(delta, axis=2, keepdims=True)
    p = delta / (s + 1e-10)
    o = p[..., None] * embedding_c                                   # (B, L, W, H)
    o = jnp.sum(o, axis=2)                                           # (B, L, H)
    return o + hidden_state


if __name__ == "__main__":
    # Small, deterministic shapes.
    B, L, W, H = 2, 8, 8, 32         # batch, char seq len, ngram words, hidden
    WORD_SIZE = 16                   # vocabulary of word_embedding_a
    LABEL_SIZE = 10                  # word_embedding_c has 10 rows (fixed in module)

    key = jax.random.PRNGKey(0)
    k1, k2, k3, k4, k5, k6 = jax.random.split(key, 6)

    # Deterministic parameter init (synthetic nn.Embedding weights).
    emb_a_table = jax.random.normal(k1, (WORD_SIZE, H), dtype=jnp.float32) * 0.1
    emb_c_table = jax.random.normal(k2, (LABEL_SIZE, H), dtype=jnp.float32) * 0.1

    # Inputs.
    word_seq = jax.random.randint(k3, (B, W), 0, WORD_SIZE, dtype=jnp.int32)
    hidden_state = jax.random.normal(k4, (B, L, H), dtype=jnp.float32)
    label_value_matrix = jax.random.randint(k5, (B, L, W), 0, LABEL_SIZE,
                                            dtype=jnp.int32)
    word_mask_metrix = jax.random.uniform(k6, (B, L, W), dtype=jnp.float32,
                                          minval=-0.5, maxval=1.5)

    out = wordkvmn_forward(word_seq, hidden_state, label_value_matrix,
                           word_mask_metrix, emb_a_table, emb_c_table)
    out = jax.block_until_ready(out)

    ref = wordkvmn_reference(word_seq, hidden_state, label_value_matrix,
                             word_mask_metrix, emb_a_table, emb_c_table)
    ref = jax.block_until_ready(ref)

    assert out.shape == (B, L, H)
    assert jnp.allclose(out, ref, atol=1e-5, rtol=1e-4), "mismatch vs reference"

    print("KERNEL_OK")
</pallas_src>

<mosaic_0001>
module attributes {stable_mosaic.version = 11 : i64} {
  func.func @_wordkvmn_kernel(%arg0: i32, %arg1: i32, %arg2: memref<1x8x32xf32, #tpu.memory_space<vmem>>, %arg3: memref<1x8x32xf32, #tpu.memory_space<vmem>>, %arg4: memref<1x8x8xi32, #tpu.memory_space<vmem>>, %arg5: memref<1x8x8xf32, #tpu.memory_space<vmem>>, %arg6: memref<10x32xf32, #tpu.memory_space<vmem>>, %arg7: memref<1x8x32xf32, #tpu.memory_space<vmem>>) attributes {dimension_semantics = [#tpu.dimension_semantics<parallel>, #tpu.dimension_semantics<parallel>], iteration_bounds = array<i64: 2, 1>, scalar_prefetch = 0 : i64, scratch_operands = 0 : i64, tpu.core_type = #tpu.core_type<tc>, window_params = [{transform_indices = @transform_0, window_bounds = array<i64: 1, 8, 32>}, {transform_indices = @transform_1, window_bounds = array<i64: 1, 8, 32>}, {transform_indices = @transform_2, window_bounds = array<i64: 1, 8, 8>}, {transform_indices = @transform_3, window_bounds = array<i64: 1, 8, 8>}, {pipeline_mode = #tpu.pipeline_mode<synchronous>, transform_indices = @transform_4, window_bounds = array<i64: 10, 32>}, {transform_indices = @transform_5, window_bounds = array<i64: 1, 8, 32>}]} {
    %c0 = arith.constant 0 : index
    %c0_0 = arith.constant 0 : index
    %c0_1 = arith.constant 0 : index
    %0 = vector.load %arg2[%c0, %c0_0, %c0_1] : memref<1x8x32xf32, #tpu.memory_space<vmem>>, vector<1x8x32xf32>
    %1 = vector.shape_cast %0 : vector<1x8x32xf32> to vector<8x32xf32>
    %c0_2 = arith.constant 0 : index
    %c0_3 = arith.constant 0 : index
    %c0_4 = arith.constant 0 : index
    %2 = vector.load %arg3[%c0_2, %c0_3, %c0_4] : memref<1x8x32xf32, #tpu.memory_space<vmem>>, vector<1x8x32xf32>
    %3 = vector.shape_cast %2 : vector<1x8x32xf32> to vector<8x32xf32>
    %c0_5 = arith.constant 0 : index
    %c0_6 = arith.constant 0 : index
    %c0_7 = arith.constant 0 : index
    %4 = vector.load %arg4[%c0_5, %c0_6, %c0_7] : memref<1x8x8xi32, #tpu.memory_space<vmem>>, vector<1x8x8xi32>
    %5 = vector.shape_cast %4 : vector<1x8x8xi32> to vector<8x8xi32>
    %c0_8 = arith.constant 0 : index
    %c0_9 = arith.constant 0 : index
    %c0_10 = arith.constant 0 : index
    %6 = vector.load %arg5[%c0_8, %c0_9, %c0_10] : memref<1x8x8xf32, #tpu.memory_space<vmem>>, vector<1x8x8xf32>
    %7 = vector.shape_cast %6 : vector<1x8x8xf32> to vector<8x8xf32>
    %cst = arith.constant 0.000000e+00 : f32
    %cst_11 = arith.constant 1.000000e+00 : f32
    %8 = vector.broadcast %cst : f32 to vector<8x8xf32>
    %9 = arith.maximumf %8, %7 : vector<8x8xf32>
    %10 = vector.broadcast %cst_11 : f32 to vector<8x8xf32>
    %11 = arith.minimumf %10, %9 : vector<8x8xf32>
    %c0_12 = arith.constant 0 : index
    %c0_13 = arith.constant 0 : index
    %12 = vector.load %arg6[%c0_12, %c0_13] : memref<10x32xf32, #tpu.memory_space<vmem>>, vector<10x32xf32>
    %cst_14 = arith.constant dense<0.000000e+00> : vector<8x8xf32>
    %13 = tpu.matmul %1, %3, %cst_14 {dimension_numbers = #tpu.dot_dimension_numbers<[1], [1], [0], [0], [0, 0, 1, 0], [], []>} : vector<8x32xf32>, vector<8x32xf32>, vector<8x8xf32> -> vector<8x8xf32>
    %cst_15 = arith.constant 5.65685415 : f32
    %14 = vector.broadcast %cst_15 : f32 to vector<8x8xf32>
    %15 = arith.divf %13, %14 : vector<8x8xf32>
    %16 = math.exp %15 : vector<8x8xf32>
    %17 = arith.mulf %16, %11 : vector<8x8xf32>
    %cst_16 = arith.constant dense<0.000000e+00> : vector<8xf32>
    %18 = vector.multi_reduction <add>, %17, %cst_16 [1] : vector<8x8xf32> to vector<8xf32>
    %19 = vector.shape_cast %18 : vector<8xf32> to vector<8x1xf32>
    %cst_17 = arith.constant 1.000000e-10 : f32
    %20 = vector.broadcast %cst_17 : f32 to vector<8x1xf32>
    %21 = arith.addf %19, %20 : vector<8x1xf32>
    %22 = tpu.reciprocal %21 : vector<8x1xf32> -> vector<8x1xf32>
    %23 = vector.broadcast %22 : vector<8x1xf32> to vector<8x8xf32>
    %24 = arith.mulf %17, %23 : vector<8x8xf32>
    %25 = tpu.iota {dimensions = array<i32: 1>} : vector<1x10xi32>
    %cst_18 = arith.constant 0.000000e+00 : f32
    %26 = vector.broadcast %cst_18 : f32 to vector<8x10xf32>
    %c0_i32 = arith.constant 0 : i32
    %27 = vector.broadcast %c0_i32 : i32 to vector<8x8xi32>
    %28 = arith.cmpi eq, %5, %27 : vector<8x8xi32>
    %cst_19 = arith.constant 0.000000e+00 : f32
    %29 = vector.broadcast %cst_19 : f32 to vector<8x8xf32>
    %30 = arith.select %28, %24, %29 : vector<8x8xi1>, vector<8x8xf32>
    %cst_20 = arith.constant dense<0.000000e+00> : vector<8xf32>
    %31 = vector.multi_reduction <add>, %30, %cst_20 [1] : vector<8x8xf32> to vector<8xf32>
    %32 = vector.shape_cast %31 : vector<8xf32> to vector<8x1xf32>
    %c0_i32_21 = arith.constant 0 : i32
    %33 = vector.broadcast %c0_i32_21 : i32 to vector<1x10xi32>
    %34 = arith.cmpi eq, %25, %33 : vector<1x10xi32>
    %cst_22 = arith.constant 0.000000e+00 : f32
    %35 = vector.shape_cast %34 : vector<1x10xi1> to vector<1x10xi1>
    %36 = vector.broadcast %35 : vector<1x10xi1> to vector<8x10xi1>
    %37 = vector.shape_cast %32 : vector<8x1xf32> to vector<8x1xf32>
    %38 = vector.broadcast %37 : vector<8x1xf32> to vector<8x10xf32>
    %39 = vector.broadcast %cst_22 : f32 to vector<8x10xf32>
    %40 = arith.select %36, %38, %39 : vector<8x10xi1>, vector<8x10xf32>
    %41 = arith.addf %26, %40 : vector<8x10xf32>
    %c1_i32 = arith.constant 1 : i32
    %42 = vector.broadcast %c1_i32 : i32 to vector<8x8xi32>
    %43 = arith.cmpi eq, %5, %42 : vector<8x8xi32>
    %cst_23 = arith.constant 0.000000e+00 : f32
    %44 = vector.broadcast %cst_23 : f32 to vector<8x8xf32>
    %45 = arith.select %43, %24, %44 : vector<8x8xi1>, vector<8x8xf32>
    %cst_24 = arith.constant dense<0.000000e+00> : vector<8xf32>
    %46 = vector.multi_reduction <add>, %45, %cst_24 [1] : vector<8x8xf32> to vector<8xf32>
    %47 = vector.shape_cast %46 : vector<8xf32> to vector<8x1xf32>
    %c1_i32_25 = arith.constant 1 : i32
    %48 = vector.broadcast %c1_i32_25 : i32 to vector<1x10xi32>
    %49 = arith.cmpi eq, %25, %48 : vector<1x10xi32>
    %cst_26 = arith.constant 0.000000e+00 : f32
    %50 = vector.shape_cast %49 : vector<1x10xi1> to vector<1x10xi1>
    %51 = vector.broadcast %50 : vector<1x10xi1> to vector<8x10xi1>
    %52 = vector.shape_cast %47 : vector<8x1xf32> to vector<8x1xf32>
    %53 = vector.broadcast %52 : vector<8x1xf32> to vector<8x10xf32>
    %54 = vector.broadcast %cst_26 : f32 to vector<8x10xf32>
    %55 = arith.select %51, %53, %54 : vector<8x10xi1>, vector<8x10xf32>
    %56 = arith.addf %41, %55 : vector<8x10xf32>
    %c2_i32 = arith.constant 2 : i32
    %57 = vector.broadcast %c2_i32 : i32 to vector<8x8xi32>
    %58 = arith.cmpi eq, %5, %57 : vector<8x8xi32>
    %cst_27 = arith.constant 0.000000e+00 : f32
    %59 = vector.broadcast %cst_27 : f32 to vector<8x8xf32>
    %60 = arith.select %58, %24, %59 : vector<8x8xi1>, vector<8x8xf32>
    %cst_28 = arith.constant dense<0.000000e+00> : vector<8xf32>
    %61 = vector.multi_reduction <add>, %60, %cst_28 [1] : vector<8x8xf32> to vector<8xf32>
    %62 = vector.shape_cast %61 : vector<8xf32> to vector<8x1xf32>
    %c2_i32_29 = arith.constant 2 : i32
    %63 = vector.broadcast %c2_i32_29 : i32 to vector<1x10xi32>
    %64 = arith.cmpi eq, %25, %63 : vector<1x10xi32>
    %cst_30 = arith.constant 0.000000e+00 : f32
    %65 = vector.shape_cast %64 : vector<1x10xi1> to vector<1x10xi1>
    %66 = vector.broadcast %65 : vector<1x10xi1> to vector<8x10xi1>
    %67 = vector.shape_cast %62 : vector<8x1xf32> to vector<8x1xf32>
    %68 = vector.broadcast %67 : vector<8x1xf32> to vector<8x10xf32>
    %69 = vector.broadcast %cst_30 : f32 to vector<8x10xf32>
    %70 = arith.select %66, %68, %69 : vector<8x10xi1>, vector<8x10xf32>
    %71 = arith.addf %56, %70 : vector<8x10xf32>
    %c3_i32 = arith.constant 3 : i32
    %72 = vector.broadcast %c3_i32 : i32 to vector<8x8xi32>
    %73 = arith.cmpi eq, %5, %72 : vector<8x8xi32>
    %cst_31 = arith.constant 0.000000e+00 : f32
    %74 = vector.broadcast %cst_31 : f32 to vector<8x8xf32>
    %75 = arith.select %73, %24, %74 : vector<8x8xi1>, vector<8x8xf32>
    %cst_32 = arith.constant dense<0.000000e+00> : vector<8xf32>
    %76 = vector.multi_reduction <add>, %75, %cst_32 [1] : vector<8x8xf32> to vector<8xf32>
    %77 = vector.shape_cast %76 : vector<8xf32> to vector<8x1xf32>
    %c3_i32_33 = arith.constant 3 : i32
    %78 = vector.broadcast %c3_i32_33 : i32 to vector<1x10xi32>
    %79 = arith.cmpi eq, %25, %78 : vector<1x10xi32>
    %cst_34 = arith.constant 0.000000e+00 : f32
    %80 = vector.shape_cast %79 : vector<1x10xi1> to vector<1x10xi1>
    %81 = vector.broadcast %80 : vector<1x10xi1> to vector<8x10xi1>
    %82 = vector.shape_cast %77 : vector<8x1xf32> to vector<8x1xf32>
    %83 = vector.broadcast %82 : vector<8x1xf32> to vector<8x10xf32>
    %84 = vector.broadcast %cst_34 : f32 to vector<8x10xf32>
    %85 = arith.select %81, %83, %84 : vector<8x10xi1>, vector<8x10xf32>
    %86 = arith.addf %71, %85 : vector<8x10xf32>
    %c4_i32 = arith.constant 4 : i32
    %87 = vector.broadcast %c4_i32 : i32 to vector<8x8xi32>
    %88 = arith.cmpi eq, %5, %87 : vector<8x8xi32>
    %cst_35 = arith.constant 0.000000e+00 : f32
    %89 = vector.broadcast %cst_35 : f32 to vector<8x8xf32>
    %90 = arith.select %88, %24, %89 : vector<8x8xi1>, vector<8x8xf32>
    %cst_36 = arith.constant dense<0.000000e+00> : vector<8xf32>
    %91 = vector.multi_reduction <add>, %90, %cst_36 [1] : vector<8x8xf32> to vector<8xf32>
    %92 = vector.shape_cast %91 : vector<8xf32> to vector<8x1xf32>
    %c4_i32_37 = arith.constant 4 : i32
    %93 = vector.broadcast %c4_i32_37 : i32 to vector<1x10xi32>
    %94 = arith.cmpi eq, %25, %93 : vector<1x10xi32>
    %cst_38 = arith.constant 0.000000e+00 : f32
    %95 = vector.shape_cast %94 : vector<1x10xi1> to vector<1x10xi1>
    %96 = vector.broadcast %95 : vector<1x10xi1> to vector<8x10xi1>
    %97 = vector.shape_cast %92 : vector<8x1xf32> to vector<8x1xf32>
    %98 = vector.broadcast %97 : vector<8x1xf32> to vector<8x10xf32>
    %99 = vector.broadcast %cst_38 : f32 to vector<8x10xf32>
    %100 = arith.select %96, %98, %99 : vector<8x10xi1>, vector<8x10xf32>
    %101 = arith.addf %86, %100 : vector<8x10xf32>
    %c5_i32 = arith.constant 5 : i32
    %102 = vector.broadcast %c5_i32 : i32 to vector<8x8xi32>
    %103 = arith.cmpi eq, %5, %102 : vector<8x8xi32>
    %cst_39 = arith.constant 0.000000e+00 : f32
    %104 = vector.broadcast %cst_39 : f32 to vector<8x8xf32>
    %105 = arith.select %103, %24, %104 : vector<8x8xi1>, vector<8x8xf32>
    %cst_40 = arith.constant dense<0.000000e+00> : vector<8xf32>
    %106 = vector.multi_reduction <add>, %105, %cst_40 [1] : vector<8x8xf32> to vector<8xf32>
    %107 = vector.shape_cast %106 : vector<8xf32> to vector<8x1xf32>
    %c5_i32_41 = arith.constant 5 : i32
    %108 = vector.broadcast %c5_i32_41 : i32 to vector<1x10xi32>
    %109 = arith.cmpi eq, %25, %108 : vector<1x10xi32>
    %cst_42 = arith.constant 0.000000e+00 : f32
    %110 = vector.shape_cast %109 : vector<1x10xi1> to vector<1x10xi1>
    %111 = vector.broadcast %110 : vector<1x10xi1> to vector<8x10xi1>
    %112 = vector.shape_cast %107 : vector<8x1xf32> to vector<8x1xf32>
    %113 = vector.broadcast %112 : vector<8x1xf32> to vector<8x10xf32>
    %114 = vector.broadcast %cst_42 : f32 to vector<8x10xf32>
    %115 = arith.select %111, %113, %114 : vector<8x10xi1>, vector<8x10xf32>
    %116 = arith.addf %101, %115 : vector<8x10xf32>
    %c6_i32 = arith.constant 6 : i32
    %117 = vector.broadcast %c6_i32 : i32 to vector<8x8xi32>
    %118 = arith.cmpi eq, %5, %117 : vector<8x8xi32>
    %cst_43 = arith.constant 0.000000e+00 : f32
    %119 = vector.broadcast %cst_43 : f32 to vector<8x8xf32>
    %120 = arith.select %118, %24, %119 : vector<8x8xi1>, vector<8x8xf32>
    %cst_44 = arith.constant dense<0.000000e+00> : vector<8xf32>
    %121 = vector.multi_reduction <add>, %120, %cst_44 [1] : vector<8x8xf32> to vector<8xf32>
    %122 = vector.shape_cast %121 : vector<8xf32> to vector<8x1xf32>
    %c6_i32_45 = arith.constant 6 : i32
    %123 = vector.broadcast %c6_i32_45 : i32 to vector<1x10xi32>
    %124 = arith.cmpi eq, %25, %123 : vector<1x10xi32>
    %cst_46 = arith.constant 0.000000e+00 : f32
    %125 = vector.shape_cast %124 : vector<1x10xi1> to vector<1x10xi1>
    %126 = vector.broadcast %125 : vector<1x10xi1> to vector<8x10xi1>
    %127 = vector.shape_cast %122 : vector<8x1xf32> to vector<8x1xf32>
    %128 = vector.broadcast %127 : vector<8x1xf32> to vector<8x10xf32>
    %129 = vector.broadcast %cst_46 : f32 to vector<8x10xf32>
    %130 = arith.select %126, %128, %129 : vector<8x10xi1>, vector<8x10xf32>
    %131 = arith.addf %116, %130 : vector<8x10xf32>
    %c7_i32 = arith.constant 7 : i32
    %132 = vector.broadcast %c7_i32 : i32 to vector<8x8xi32>
    %133 = arith.cmpi eq, %5, %132 : vector<8x8xi32>
    %cst_47 = arith.constant 0.000000e+00 : f32
    %134 = vector.broadcast %cst_47 : f32 to vector<8x8xf32>
    %135 = arith.select %133, %24, %134 : vector<8x8xi1>, vector<8x8xf32>
    %cst_48 = arith.constant dense<0.000000e+00> : vector<8xf32>
    %136 = vector.multi_reduction <add>, %135, %cst_48 [1] : vector<8x8xf32> to vector<8xf32>
    %137 = vector.shape_cast %136 : vector<8xf32> to vector<8x1xf32>
    %c7_i32_49 = arith.constant 7 : i32
    %138 = vector.broadcast %c7_i32_49 : i32 to vector<1x10xi32>
    %139 = arith.cmpi eq, %25, %138 : vector<1x10xi32>
    %cst_50 = arith.constant 0.000000e+00 : f32
    %140 = vector.shape_cast %139 : vector<1x10xi1> to vector<1x10xi1>
    %141 = vector.broadcast %140 : vector<1x10xi1> to vector<8x10xi1>
    %142 = vector.shape_cast %137 : vector<8x1xf32> to vector<8x1xf32>
    %143 = vector.broadcast %142 : vector<8x1xf32> to vector<8x10xf32>
    %144 = vector.broadcast %cst_50 : f32 to vector<8x10xf32>
    %145 = arith.select %141, %143, %144 : vector<8x10xi1>, vector<8x10xf32>
    %146 = arith.addf %131, %145 : vector<8x10xf32>
    %c8_i32 = arith.constant 8 : i32
    %147 = vector.broadcast %c8_i32 : i32 to vector<8x8xi32>
    %148 = arith.cmpi eq, %5, %147 : vector<8x8xi32>
    %cst_51 = arith.constant 0.000000e+00 : f32
    %149 = vector.broadcast %cst_51 : f32 to vector<8x8xf32>
    %150 = arith.select %148, %24, %149 : vector<8x8xi1>, vector<8x8xf32>
    %cst_52 = arith.constant dense<0.000000e+00> : vector<8xf32>
    %151 = vector.multi_reduction <add>, %150, %cst_52 [1] : vector<8x8xf32> to vector<8xf32>
    %152 = vector.shape_cast %151 : vector<8xf32> to vector<8x1xf32>
    %c8_i32_53 = arith.constant 8 : i32
    %153 = vector.broadcast %c8_i32_53 : i32 to vector<1x10xi32>
    %154 = arith.cmpi eq, %25, %153 : vector<1x10xi32>
    %cst_54 = arith.constant 0.000000e+00 : f32
    %155 = vector.shape_cast %154 : vector<1x10xi1> to vector<1x10xi1>
    %156 = vector.broadcast %155 : vector<1x10xi1> to vector<8x10xi1>
    %157 = vector.shape_cast %152 : vector<8x1xf32> to vector<8x1xf32>
    %158 = vector.broadcast %157 : vector<8x1xf32> to vector<8x10xf32>
    %159 = vector.broadcast %cst_54 : f32 to vector<8x10xf32>
    %160 = arith.select %156, %158, %159 : vector<8x10xi1>, vector<8x10xf32>
    %161 = arith.addf %146, %160 : vector<8x10xf32>
    %c9_i32 = arith.constant 9 : i32
    %162 = vector.broadcast %c9_i32 : i32 to vector<8x8xi32>
    %163 = arith.cmpi eq, %5, %162 : vector<8x8xi32>
    %cst_55 = arith.constant 0.000000e+00 : f32
    %164 = vector.broadcast %cst_55 : f32 to vector<8x8xf32>
    %165 = arith.select %163, %24, %164 : vector<8x8xi1>, vector<8x8xf32>
    %cst_56 = arith.constant dense<0.000000e+00> : vector<8xf32>
    %166 = vector.multi_reduction <add>, %165, %cst_56 [1] : vector<8x8xf32> to vector<8xf32>
    %167 = vector.shape_cast %166 : vector<8xf32> to vector<8x1xf32>
    %c9_i32_57 = arith.constant 9 : i32
    %168 = vector.broadcast %c9_i32_57 : i32 to vector<1x10xi32>
    %169 = arith.cmpi eq, %25, %168 : vector<1x10xi32>
    %cst_58 = arith.constant 0.000000e+00 : f32
    %170 = vector.shape_cast %169 : vector<1x10xi1> to vector<1x10xi1>
    %171 = vector.broadcast %170 : vector<1x10xi1> to vector<8x10xi1>
    %172 = vector.shape_cast %167 : vector<8x1xf32> to vector<8x1xf32>
    %173 = vector.broadcast %172 : vector<8x1xf32> to vector<8x10xf32>
    %174 = vector.broadcast %cst_58 : f32 to vector<8x10xf32>
    %175 = arith.select %171, %173, %174 : vector<8x10xi1>, vector<8x10xf32>
    %176 = arith.addf %161, %175 : vector<8x10xf32>
    %cst_59 = arith.constant dense<0.000000e+00> : vector<8x32xf32>
    %177 = tpu.matmul %176, %12, %cst_59 {dimension_numbers = #tpu.dot_dimension_numbers<[1], [0], [0], [1], [0, 0, 1, 1], [], []>} : vector<8x10xf32>, vector<10x32xf32>, vector<8x32xf32> -> vector<8x32xf32>
    %178 = arith.addf %177, %1 : vector<8x32xf32>
    %c0_60 = arith.constant 0 : index
    %c0_61 = arith.constant 0 : index
    %c0_62 = arith.constant 0 : index
    %179 = vector.load %arg7[%c0_60, %c0_61, %c0_62] : memref<1x8x32xf32, #tpu.memory_space<vmem>>, vector<1x8x32xf32>
    %180 = vector.shape_cast %179 : vector<1x8x32xf32> to vector<8x32xf32>
    %181 = vector.shape_cast %178 : vector<8x32xf32> to vector<1x8x32xf32>
    tpu.vector_store %arg7[%c0_60, %c0_61, %c0_62], %181 {strides = array<i32>} : memref<1x8x32xf32, #tpu.memory_space<vmem>>, vector<1x8x32xf32>,
    return
  }
  func.func @transform_0(%arg0: i32, %arg1: i32) -> (i32, i32, i32) {
    %c0_i32 = arith.constant 0 : i32
    %c0_i32_0 = arith.constant 0 : i32
    return %arg0, %arg1, %c0_i32 : i32, i32, i32
  }
  func.func @transform_1(%arg0: i32, %arg1: i32) -> (i32, i32, i32) {
    %c0_i32 = arith.constant 0 : i32
    %c0_i32_0 = arith.constant 0 : i32
    %c0_i32_1 = arith.constant 0 : i32
    return %arg0, %c0_i32, %c0_i32_0 : i32, i32, i32
  }
  func.func @transform_2(%arg0: i32, %arg1: i32) -> (i32, i32, i32) {
    %c0_i32 = arith.constant 0 : i32
    %c0_i32_0 = arith.constant 0 : i32
    return %arg0, %arg1, %c0_i32 : i32, i32, i32
  }
  func.func @transform_3(%arg0: i32, %arg1: i32) -> (i32, i32, i32) {
    %c0_i32 = arith.constant 0 : i32
    %c0_i32_0 = arith.constant 0 : i32
    return %arg0, %arg1, %c0_i32 : i32, i32, i32
  }
  func.func @transform_4(%arg0: i32, %arg1: i32) -> (i32, i32) {
    %c0_i32 = arith.constant 0 : i32
    %c0_i32_0 = arith.constant 0 : i32
    %c0_i32_1 = arith.constant 0 : i32
    return %c0_i32, %c0_i32_0 : i32, i32
  }
  func.func @transform_5(%arg0: i32, %arg1: i32) -> (i32, i32, i32) {
    %c0_i32 = arith.constant 0 : i32
    %c0_i32_0 = arith.constant 0 : i32
    return %arg0, %arg1, %c0_i32 : i32, i32, i32
  }
}

</mosaic_0001>

<llo_original>
// kernel: tpu_custom_call.1
$region0: #{tpu_custom_call.1}
  #allocation0 [shape = 'u32[]', space=smem, size = 0x4, offset = 0x4, fixed_abs, tag = 'smem constant byte address 0x4 - core index']
  #allocation1 [shape = 'u32[144,128]{1,0:T(1,128)}', space=vmem, size = 0x12000, scoped, tag = 'internal scratch']
  %s0 = inlined_call_operand.hbm [shape: f32[2,8,32], index: 0, kind: input, shape index: {}]
  %s1 = inlined_call_operand.hbm [shape: f32[2,8,32], index: 1, kind: input, shape index: {}]
  %s2 = inlined_call_operand.hbm [shape: s32[2,8,8], index: 2, kind: input, shape index: {}]
  %s3 = inlined_call_operand.hbm [shape: f32[2,8,8], index: 3, kind: input, shape index: {}]
  %s4 = inlined_call_operand.hbm [shape: f32[10,32], index: 4, kind: input, shape index: {}]
  %s5 = inlined_call_operand.hbm [shape: f32[2,8,32], index: 5, kind: output, shape index: {}]
  %s6 = sld [smem:[#allocation0]]
  $region73: #{tpu_custom_call.1} parent=0
    _
  %s8 = ssub.s32 1, %s6
  %s9 = scalar_select 0, %s8, %s6
  $region1: #{tpu_custom_call.1} parent=0
    #allocation2 [shape = 'u8[8192]{0}', space=vmem, size = 0x2000, scoped, tag = 'input window, operand 0']
    #allocation3 [shape = 's32[2]{0}', space=sflag, size = 0x8, scoped, tag = 'scoped memory for tpu_custom_call.1']
    #allocation4 [shape = 's32[2]{0}', space=sflag, size = 0x8, scoped, tag = 'scoped memory for tpu_custom_call.1']
    #allocation5 [shape = 'u8[8192]{0}', space=vmem, size = 0x2000, scoped, tag = 'input window, operand 1']
    #allocation6 [shape = 's32[2]{0}', space=sflag, size = 0x8, scoped, tag = 'scoped memory for tpu_custom_call.1']
    #allocation7 [shape = 'u8[8192]{0}', space=vmem, size = 0x2000, scoped, tag = 'input window, operand 2']
    #allocation8 [shape = 'u8[8192]{0}', space=vmem, size = 0x2000, scoped, tag = 'input window, operand 3']
    #allocation9 [shape = 's32[2]{0}', space=sflag, size = 0x8, scoped, tag = 'scoped memory for tpu_custom_call.1']
    #allocation10 [shape = 'u8[8192]{0}', space=vmem, size = 0x2000, scoped, tag = 'input window, operand 4, single buffered']
    #allocation11 [shape = 'u8[8192]{0}', space=vmem, size = 0x2000, scoped, tag = 'output window, operand 0']
    %10 = vsyncpa [#allocation3], 0
    %s11 = scalar_lea.sflag [#allocation3], 1
    %12 = vsyncpa %s11, 0
    %13 = vsyncpa [#allocation6], 0
    %s14 = scalar_lea.sflag [#allocation6], 1
    %15 = vsyncpa %s14, 0
    %16 = vsyncpa [#allocation9], 0
    %s17 = scalar_lea.sflag [#allocation9], 1
    %18 = vsyncpa %s17, 0
    %19 = vsyncpa [#allocation4], 0
    %s20 = scalar_lea.sflag [#allocation4], 1
    %21 = vsyncpa %s20, 0
    loop: start=0, step=1, limit=4
    $region2: #{tpu_custom_call.1} parent=1 // loop_pre_header
      _
    $region3: #{tpu_custom_call.1} parent=1 // loop_header
      %s23 = sphi 0, %s27
      %p24 = scmp.ge.s32.totalorder %s23, 4
      %s30 = sphi 0, %s42
      %s31 = sphi 0, %s38
      %s32 = sphi 0, %s30
      %s33 = sphi 0, %s31
      %s34 = sphi 0, %s32
      %s35 = sphi 0, %s33
      %s47 = sphi 0, %s49
      %s50 = sphi 0, %s47
      %s51 = sphi 0, %s50
      %s67 = sphi 0, %s51
      %s73 = sphi 0, %s75
      %s76 = sphi 0, %s73
      %s77 = sphi 0, %s76
      %s93 = sphi 0, %s77
      %s101 = sphi 0, %s103
      %s104 = sphi 0, %s101
      %s105 = sphi 0, %s104
      %s121 = sphi 0, %s105
      %s129 = sphi 0, %s131
      %s132 = sphi 0, %s129
      %s133 = sphi 0, %s132
      %s149 = sphi 0, %s133
      %s153 = sphi 0, %s153
      %s155 = sphi 0, %s153
      %s156 = sphi 0, %s155
      %s170 = sphi 0, %s156
      %s178 = sphi 0, %s180
      %s181 = sphi 0, %s178
      %s182 = sphi 0, %s181
      %s198 = sphi 0, %s182
    $region4: #{tpu_custom_call.1} parent=1 // loop_header_branch
      %26 = sbr.rel (%p24) target = $region8
    $region5: #{tpu_custom_call.1} parent=1 // loop_body
      %s28 = ssub.s32 %s23, 1
      %s29 = ssub.s32 %s23, 2
      %s36 = sadd.s32 1, %s31
      %p37 = scmp.ge.s32.totalorder %s36, 1
      %s38 = scalar_select %p37, 0, %s36
      %s39 = sadd.s32 1, %s30
      %s40 = scalar_select %p37, %s39, %s30
      %p41 = scmp.ge.s32.totalorder %s40, 2
      %s42 = scalar_select %p41, 0, %s40
      %s43 = ssub.s32 %s30, %s42
      %s44 = ssub.s32 %s31, %s38
      %s45 = sor.u32 %s43, %s44
      %p46 = scmp.eq.s32.totalorder %s45, 0
      %s48 = sadd.s32 %s47, 1
      %s49 = scalar_select %p46, %s47, %s48
      %p52 = pneg %p46
      %p53 = scmp.eq.s32.totalorder %s23, 1
      %p54 = por %p52, %p53
      %p55 = scmp.ne.s32.totalorder %s47, %s50
      %p56 = scmp.eq.s32.totalorder %s23, 0
      %p57 = por %p55, %p56
      %p58 = scmp.ne.s32.totalorder %s47, %s50
      %p59 = scmp.eq.s32.totalorder %s28, 1
      %p60 = por %p58, %p59
      %p61 = scmp.ne.s32.totalorder %s50, %s51
      %p62 = scmp.eq.s32.totalorder %s28, 0
      %p63 = por %p61, %p62
      %p64 = scmp.ne.s32.totalorder %s50, %s51
      %p65 = scmp.eq.s32.totalorder %s29, 1
      %p66 = por %p64, %p65
      %p68 = scmp.ne.s32.totalorder %s51, %s67
      %p69 = scmp.eq.s32.totalorder %s29, 0
      %p70 = por %p68, %p69
      %s71 = ssub.s32 %s30, %s42
      %p72 = scmp.eq.s32.totalorder %s71, 0
      %s74 = sadd.s32 %s73, 1
      %s75 = scalar_select %p72, %s73, %s74
      %p78 = pneg %p72
      %p79 = scmp.eq.s32.totalorder %s23, 1
      %p80 = por %p78, %p79
      %p81 = scmp.ne.s32.totalorder %s73, %s76
      %p82 = scmp.eq.s32.totalorder %s23, 0
      %p83 = por %p81, %p82
      %p84 = scmp.ne.s32.totalorder %s73, %s76
      %p85 = scmp.eq.s32.totalorder %s28, 1
      %p86 = por %p84, %p85
      %p87 = scmp.ne.s32.totalorder %s76, %s77
      %p88 = scmp.eq.s32.totalorder %s28, 0
      %p89 = por %p87, %p88
      %p90 = scmp.ne.s32.totalorder %s76, %s77
      %p91 = scmp.eq.s32.totalorder %s29, 1
      %p92 = por %p90, %p91
      %p94 = scmp.ne.s32.totalorder %s77, %s93
      %p95 = scmp.eq.s32.totalorder %s29, 0
      %p96 = por %p94, %p95
      %s97 = ssub.s32 %s30, %s42
      %s98 = ssub.s32 %s31, %s38
      %s99 = sor.u32 %s97, %s98
      %p100 = scmp.eq.s32.totalorder %s99, 0
      %s102 = sadd.s32 %s101, 1
      %s103 = scalar_select %p100, %s101, %s102
      %p106 = pneg %p100
      %p107 = scmp.eq.s32.totalorder %s23, 1
      %p108 = por %p106, %p107
      %p109 = scmp.ne.s32.totalorder %s101, %s104
      %p110 = scmp.eq.s32.totalorder %s23, 0
      %p111 = por %p109, %p110
      %p112 = scmp.ne.s32.totalorder %s101, %s104
      %p113 = scmp.eq.s32.totalorder %s28, 1
      %p114 = por %p112, %p113
      %p115 = scmp.ne.s32.totalorder %s104, %s105
      %p116 = scmp.eq.s32.totalorder %s28, 0
      %p117 = por %p115, %p116
      %p118 = scmp.ne.s32.totalorder %s104, %s105
      %p119 = scmp.eq.s32.totalorder %s29, 1
      %p120 = por %p118, %p119
      %p122 = scmp.ne.s32.totalorder %s105, %s121
      %p123 = scmp.eq.s32.totalorder %s29, 0
      %p124 = por %p122, %p123
      %s125 = ssub.s32 %s30, %s42
      %s126 = ssub.s32 %s31, %s38
      %s127 = sor.u32 %s125, %s126
      %p128 = scmp.eq.s32.totalorder %s127, 0
      %s130 = sadd.s32 %s129, 1
      %s131 = scalar_select %p128, %s129, %s130
      %p134 = pneg %p128
      %p135 = scmp.eq.s32.totalorder %s23, 1
      %p136 = por %p134, %p135
      %p137 = scmp.ne.s32.totalorder %s129, %s132
      %p138 = scmp.eq.s32.totalorder %s23, 0
      %p139 = por %p137, %p138
      %p140 = scmp.ne.s32.totalorder %s129, %s132
      %p141 = scmp.eq.s32.totalorder %s28, 1
      %p142 = por %p140, %p141
      %p143 = scmp.ne.s32.totalorder %s132, %s133
      %p144 = scmp.eq.s32.totalorder %s28, 0
      %p145 = por %p143, %p144
      %p146 = scmp.ne.s32.totalorder %s132, %s133
      %p147 = scmp.eq.s32.totalorder %s29, 1
      %p148 = por %p146, %p147
      %p150 = scmp.ne.s32.totalorder %s133, %s149
      %p151 = scmp.eq.s32.totalorder %s29, 0
      %p152 = por %p150, %p151
      %s154 = sadd.s32 %s153, 1
      %p157 = scmp.eq.s32.totalorder %s23, 1
      %p158 = scmp.ne.s32.totalorder %s153, %s155
      %p159 = scmp.eq.s32.totalorder %s23, 0
      %p160 = por %p158, %p159
      %p161 = scmp.ne.s32.totalorder %s153, %s155
      %p162 = scmp.eq.s32.totalorder %s28, 1
      %p163 = por %p161, %p162
      %p164 = scmp.ne.s32.totalorder %s155, %s156
      %p165 = scmp.eq.s32.totalorder %s28, 0
      %p166 = por %p164, %p165
      %p167 = scmp.ne.s32.totalorder %s155, %s156
      %p168 = scmp.eq.s32.totalorder %s29, 1
      %p169 = por %p167, %p168
      %p171 = scmp.ne.s32.totalorder %s156, %s170
      %p172 = scmp.eq.s32.totalorder %s29, 0
      %p173 = por %p171, %p172
      %s174 = ssub.s32 %s30, %s42
      %s175 = ssub.s32 %s31, %s38
      %s176 = sor.u32 %s174, %s175
      %p177 = scmp.eq.s32.totalorder %s176, 0
      %s179 = sadd.s32 %s178, 1
      %s180 = scalar_select %p177, %s178, %s179
      %p183 = pneg %p177
      %p184 = scmp.eq.s32.totalorder %s23, 1
      %p185 = por %p183, %p184
      %p186 = scmp.ne.s32.totalorder %s178, %s181
      %p187 = scmp.eq.s32.totalorder %s23, 0
      %p188 = por %p186, %p187
      %p189 = scmp.ne.s32.totalorder %s178, %s181
      %p190 = scmp.eq.s32.totalorder %s28, 1
      %p191 = por %p189, %p190
      %p192 = scmp.ne.s32.totalorder %s181, %s182
      %p193 = scmp.eq.s32.totalorder %s28, 0
      %p194 = por %p192, %p193
      %p195 = scmp.ne.s32.totalorder %s181, %s182
      %p196 = scmp.eq.s32.totalorder %s29, 1
      %p197 = por %p195, %p196
      %p199 = scmp.ne.s32.totalorder %s182, %s198
      %p200 = scmp.eq.s32.totalorder %s29, 0
      %p201 = por %p199, %p200
      %p202 = scmp.le.s32.totalorder 1, %s23
      %p203 = scmp.lt.s32.totalorder %s23, 3
      %p204 = pnand %p202, %p203
      %p205 = pneg %p204
      // Predicated region
      $region9: #{tpu_custom_call.1} parent=5 // pred_check
        _
      $region10: #{tpu_custom_call.1} parent=5 // pred_check_branch
        %207 = sbr.rel (%p204) target = $region12
      $region11: #{tpu_custom_call.1} parent=5 // pred_region
        %s208 = ssub.s32 %s23, 1
        // Predicated region
        $region13: #{tpu_custom_call.1} parent=11 // pred_check
          %p209 = pneg %p166
        $region14: #{tpu_custom_call.1} parent=11 // pred_check_branch
          %211 = sbr.rel (%p209) target = $region16
        $region15: #{tpu_custom_call.1} parent=11 // pred_region
          %s213 = ssub.s32 256, 256
          %214 = vsyncadd [#allocation9], %s213
          %s215 = sshll.u32 [#allocation10], 4
          %s216 = int_to_ptr.vmem [resolvable:$true] %s215
          %221 = dma.hbm_to_vmem [thread:$0]  %s4, 256, %s216, [#allocation9], 128, 128, 8
        $region16: #{tpu_custom_call.1} parent=11 // pred_fallthru
          _
      $region12: #{tpu_custom_call.1} parent=5 // pred_fallthru
        _
      %p222 = scmp.lt.s32.totalorder %s23, 2
      // Predicated region
      $region17: #{tpu_custom_call.1} parent=5 // pred_check
        %p223 = pneg %p222
      $region18: #{tpu_custom_call.1} parent=5 // pred_check_branch
        %225 = sbr.rel (%p223) target = $region20
      $region19: #{tpu_custom_call.1} parent=5 // pred_region
        // Predicated region
        $region21: #{tpu_custom_call.1} parent=19 // pred_check
          %p226 = pneg %p57
        $region22: #{tpu_custom_call.1} parent=19 // pred_check_branch
          %228 = sbr.rel (%p226) target = $region24
        $region23: #{tpu_custom_call.1} parent=19 // pred_region
          %s229 = sand.u32 %s47, 1
          %s230 = scalar_lea.sflag [#allocation3], %s229
          %s231 = sand.u32 %s47, 1
          %s232 = smul.addr %s231, 8
          %s233 = scalar_lea.vmem [#allocation2], %s232
          %s235 = ssub.s32 128, 128
          %236 = vsyncadd %s230, %s235
          %s237 = sadd.s32 %s31, %s30
          %s238 = smul.addr %s237, 128
          %s239 = scalar_lea.hbm %s0, %s238
          %s241 = sshll.u32 %s233, 4
          %s242 = int_to_ptr.vmem [resolvable:$true] %s241
          %244 = dma.hbm_to_vmem [thread:$0]  %s239, 128, %s242, %s230
        $region24: #{tpu_custom_call.1} parent=19 // pred_fallthru
          _
        // Predicated region
        $region25: #{tpu_custom_call.1} parent=19 // pred_check
          %p245 = pneg %p83
        $region26: #{tpu_custom_call.1} parent=19 // pred_check_branch
          %247 = sbr.rel (%p245) target = $region28
        $region27: #{tpu_custom_call.1} parent=19 // pred_region
          %s248 = sand.u32 %s23, 1
          %s249 = scalar_lea.sflag [#allocation6], %s248
          %s250 = sand.u32 %s73, 1
          %s251 = smul.addr %s250, 8
          %s252 = scalar_lea.vmem [#allocation5], %s251
          %s254 = ssub.s32 128, 128
          %255 = vsyncadd %s249, %s254
          %s256 = smul.addr %s30, 128
          %s257 = scalar_lea.hbm %s1, %s256
          %s259 = sshll.u32 %s252, 4
          %s260 = int_to_ptr.vmem [resolvable:$true] %s259
          %262 = dma.hbm_to_vmem [thread:$0]  %s257, 128, %s260, %s249
        $region28: #{tpu_custom_call.1} parent=19 // pred_fallthru
          _
        // Predicated region
        $region29: #{tpu_custom_call.1} parent=19 // pred_check
          %p263 = pneg %p111
        $region30: #{tpu_custom_call.1} parent=19 // pred_check_branch
          %265 = sbr.rel (%p263) target = $region32
        $region31: #{tpu_custom_call.1} parent=19 // pred_region
          %s266 = sand.u32 %s23, 1
          %s267 = scalar_lea.sflag [#allocation6], %s266
          %s268 = sand.u32 %s101, 1
          %s269 = smul.addr %s268, 8
          %s270 = scalar_lea.vmem [#allocation7], %s269
          %s272 = ssub.s32 128, 128
          %273 = vsyncadd %s267, %s272
          %s274 = sadd.s32 %s31, %s30
          %s275 = smul.addr %s274, 128
          %s276 = scalar_lea.hbm %s2, %s275
          %s278 = sshll.u32 %s270, 4
          %s279 = int_to_ptr.vmem [resolvable:$true] %s278
          %281 = dma.hbm_to_vmem [thread:$0]  %s276, 128, %s279, %s267
        $region32: #{tpu_custom_call.1} parent=19 // pred_fallthru
          _
        // Predicated region
        $region33: #{tpu_custom_call.1} parent=19 // pred_check
          %p282 = pneg %p139
        $region34: #{tpu_custom_call.1} parent=19 // pred_check_branch
          %284 = sbr.rel (%p282) target = $region36
        $region35: #{tpu_custom_call.1} parent=19 // pred_region
          %s285 = sand.u32 %s23, 1
          %s286 = scalar_lea.sflag [#allocation9], %s285
          %s287 = sand.u32 %s129, 1
          %s288 = smul.addr %s287, 8
          %s289 = scalar_lea.vmem [#allocation8], %s288
          %s291 = ssub.s32 128, 128
          %292 = vsyncadd %s286, %s291
          %s293 = sadd.s32 %s31, %s30
          %s294 = smul.addr %s293, 128
          %s295 = scalar_lea.hbm %s3, %s294
          %s297 = sshll.u32 %s289, 4
          %s298 = int_to_ptr.vmem [resolvable:$true] %s297
          %300 = dma.hbm_to_vmem [thread:$0]  %s295, 128, %s298, %s286
        $region36: #{tpu_custom_call.1} parent=19 // pred_fallthru
          _
      $region20: #{tpu_custom_call.1} parent=5 // pred_fallthru
        _
      %p301 = scmp.le.s32.totalorder 1, %s23
      %p302 = scmp.lt.s32.totalorder %s23, 3
      %p303 = pnand %p301, %p302
      %p304 = pneg %p303
      // Predicated region
      $region37: #{tpu_custom_call.1} parent=5 // pred_check
        _
      $region38: #{tpu_custom_call.1} parent=5 // pred_check_branch
        %306 = sbr.rel (%p303) target = $region40
      $region39: #{tpu_custom_call.1} parent=5 // pred_region
        %s307 = ssub.s32 %s23, 1
        %s308 = sand.u32 %s50, 1
        %s309 = scalar_lea.sflag [#allocation3], %s308
        %s310 = sand.u32 %s50, 1
        %s311 = smul.addr %s310, 8
        %s312 = scalar_lea.vmem [#allocation2], %s311
        // Predicated region
        $region41: #{tpu_custom_call.1} parent=39 // pred_check
          %p313 = pneg %p63
        $region42: #{tpu_custom_call.1} parent=39 // pred_check_branch
          %315 = sbr.rel (%p313) target = $region44
        $region43: #{tpu_custom_call.1} parent=39 // pred_region
          %316 = dma.done %s309, 128
        $region44: #{tpu_custom_call.1} parent=39 // pred_fallthru
          _
        %s317 = sand.u32 %s28, 1
        %s318 = scalar_lea.sflag [#allocation6], %s317
        %s319 = sand.u32 %s76, 1
        %s320 = smul.addr %s319, 8
        %s321 = scalar_lea.vmem [#allocation5], %s320
        // Predicated region
        $region45: #{tpu_custom_call.1} parent=39 // pred_check
          %p322 = pneg %p89
        $region46: #{tpu_custom_call.1} parent=39 // pred_check_branch
          %324 = sbr.rel (%p322) target = $region48
        $region47: #{tpu_custom_call.1} parent=39 // pred_region
          %325 = dma.done %s318, 128
        $region48: #{tpu_custom_call.1} parent=39 // pred_fallthru
          _
        %s326 = sand.u32 %s28, 1
        %s327 = scalar_lea.sflag [#allocation6], %s326
        %s328 = sand.u32 %s104, 1
        %s329 = smul.addr %s328, 8
        %s330 = scalar_lea.vmem [#allocation7], %s329
        // Predicated region
        $region49: #{tpu_custom_call.1} parent=39 // pred_check
          %p331 = pneg %p117
        $region50: #{tpu_custom_call.1} parent=39 // pred_check_branch
          %333 = sbr.rel (%p331) target = $region52
        $region51: #{tpu_custom_call.1} parent=39 // pred_region
          %334 = dma.done %s327, 128
        $region52: #{tpu_custom_call.1} parent=39 // pred_fallthru
          _
        %s335 = sand.u32 %s28, 1
        %s336 = scalar_lea.sflag [#allocation9], %s335
        %s337 = sand.u32 %s132, 1
        %s338 = smul.addr %s337, 8
        %s339 = scalar_lea.vmem [#allocation8], %s338
        // Predicated region
        $region53: #{tpu_custom_call.1} parent=39 // pred_check
          %p340 = pneg %p145
        $region54: #{tpu_custom_call.1} parent=39 // pred_check_branch
          %342 = sbr.rel (%p340) target = $region56
        $region55: #{tpu_custom_call.1} parent=39 // pred_region
          %343 = dma.done %s336, 128
        $region56: #{tpu_custom_call.1} parent=39 // pred_fallthru
          _
        // Predicated region
        $region57: #{tpu_custom_call.1} parent=39 // pred_check
          %p344 = pneg %p166
        $region58: #{tpu_custom_call.1} parent=39 // pred_check_branch
          %346 = sbr.rel (%p344) target = $region60
        $region59: #{tpu_custom_call.1} parent=39 // pred_region
          %347 = dma.done [#allocation9], 256
        $region60: #{tpu_custom_call.1} parent=39 // pred_fallthru
          _
        %s348 = sand.u32 %s50, 1
        %s349 = scalar_lea.sflag [#allocation3], %s348
        %s350 = sand.u32 %s50, 1
        %s351 = smul.addr %s350, 8
        %s352 = scalar_lea.vmem [#allocation2], %s351
        %p353 = pneg %p63
        %p354 = pneg %p60
        %s355 = sand.u32 %s28, 1
        %s356 = scalar_lea.sflag [#allocation6], %s355
        %s357 = sand.u32 %s76, 1
        %s358 = smul.addr %s357, 8
        %s359 = scalar_lea.vmem [#allocation5], %s358
        %p360 = pneg %p89
        %p361 = pneg %p86
        %s362 = sand.u32 %s28, 1
        %s363 = scalar_lea.sflag [#allocation6], %s362
        %s364 = sand.u32 %s104, 1
        %s365 = smul.addr %s364, 8
        %s366 = scalar_lea.vmem [#allocation7], %s365
        %p367 = pneg %p117
        %p368 = pneg %p114
        %s369 = sand.u32 %s28, 1
        %s370 = scalar_lea.sflag [#allocation9], %s369
        %s371 = sand.u32 %s132, 1
        %s372 = smul.addr %s371, 8
        %s373 = scalar_lea.vmem [#allocation8], %s372
        %p374 = pneg %p145
        %p375 = pneg %p142
        %p376 = pneg %p166
        %p377 = pneg %p163
        %p378 = pneg %p194
        %p379 = pneg %p191
        %s380 = sand.u32 %s181, 1
        %s381 = scalar_lea.sflag [#allocation4], %s380
        %s382 = sand.u32 %s181, 1
        %s383 = smul.addr %s382, 8
        %s384 = scalar_lea.vmem [#allocation11], %s383
        %v385 = vld [vmem:[%s312] sm:$0xff]
        %v386 = vld [vmem:[%s321] sm:$0xff]
        %v387 = vld [vmem:[%s330] sm:$0xff]
        %v388 = vld [vmem:[%s339] sm:$0xff]
        %v389 = vmax.f32 %v388, 0.0
        %v390 = vmin.f32 %v389, 1.0
        %v391 = vld [vmem:[#allocation10] sm:$0xff]
        %v392 = vld [vmem:[#allocation10 + $0x8] sm:$0x3]
        %vm393 = vcmask 261120
        %v395 = vsel %vm393, %v385, 0
        %v398 = vsel %vm393, %v386, 0
        %400 = vmatprep.subr.mxu0 0.0
        %401 = vmatpush1.xpose.msra.mxu0 %v398
        %402 = vmatprep.subr.mxu0 0.0
        %403 = vmatpush1.xpose.msra.mxu0 0.0
        %404 = vmatprep.subr.mxu0 0.0
        %405 = vmatpush1.xpose.msra.mxu0 0.0
        %406 = vmatprep.subr.mxu0 0.0
        %407 = vmatpush1.xpose.msra.mxu0 0.0
        %408 = vmatprep.subr.mxu0 0.0
        %409 = vmatpush1.xpose.msra.mxu0 0.0
        %410 = vmatprep.subr.mxu0 0.0
        %411 = vmatpush1.xpose.msra.mxu0 0.0
        %412 = vmatprep.subr.mxu0 0.0
        %413 = vmatpush1.xpose.msra.mxu0 0.0
        %414 = vmatprep.subr.mxu0 0.0
        %415 = vmatpush1.xpose.msra.mxu0 0.0
        %416 = vmatprep.subr.mxu0 0.0
        %417 = vmatpush1.xpose.msra.mxu0 0.0
        %418 = vmatprep.subr.mxu0 0.0
        %419 = vmatpush1.xpose.msra.mxu0 0.0
        %420 = vmatprep.subr.mxu0 0.0
        %421 = vmatpush1.xpose.msra.mxu0 0.0
        %422 = vmatprep.subr.mxu0 0.0
        %423 = vmatpush1.xpose.msra.mxu0 0.0
        %424 = vmatprep.subr.mxu0 0.0
        %425 = vmatpush1.xpose.msra.mxu0 0.0
        %426 = vmatprep.subr.mxu0 0.0
        %427 = vmatpush1.xpose.msra.mxu0 0.0
        %428 = vmatprep.subr.mxu0 0.0
        %429 = vmatpush1.xpose.msra.mxu0 0.0
        %430 = vmatprep.subr.mxu0 0.0
        %431 = vmatpush1.xpose.msra.mxu0 0.0
        %432 = vmatprep.subr.mxu0 0.0
        %433 = vmatpush1.xpose.msra.mxu0 0.0
        %434 = vmatprep.subr.mxu0 0.0
        %435 = vmatpush1.xpose.msra.mxu0 0.0
        %436 = vmatprep.subr.mxu0 0.0
        %437 = vmatpush1.xpose.msra.mxu0 0.0
        %438 = vmatprep.subr.mxu0 0.0
        %439 = vmatpush1.xpose.msra.mxu0 0.0
        %440 = vmatprep.subr.mxu0 0.0
        %441 = vmatpush1.xpose.msra.mxu0 0.0
        %442 = vmatprep.subr.mxu0 0.0
        %443 = vmatpush1.xpose.msra.mxu0 0.0
        %444 = vmatprep.subr.mxu0 0.0
        %445 = vmatpush1.xpose.msra.mxu0 0.0
        %446 = vmatprep.subr.mxu0 0.0
        %447 = vmatpush1.xpose.msra.mxu0 0.0
        %448 = vmatprep.subr.mxu0 0.0
        %449 = vmatpush1.xpose.msra.mxu0 0.0
        %450 = vmatprep.subr.mxu0 0.0
        %451 = vmatpush1.xpose.msra.mxu0 0.0
        %452 = vmatprep.subr.mxu0 0.0
        %453 = vmatpush1.xpose.msra.mxu0 0.0
        %454 = vmatprep.subr.mxu0 0.0
        %455 = vmatpush1.xpose.msra.mxu0 0.0
        %456 = vmatprep.subr.mxu0 0.0
        %457 = vmatpush1.xpose.msra.mxu0 0.0
        %458 = vmatprep.subr.mxu0 0.0
        %459 = vmatpush1.xpose.msra.mxu0 0.0
        %460 = vmatprep.subr.mxu0 0.0
        %461 = vmatpush1.xpose.msra.mxu0 0.0
        %462 = vmatprep.subr.mxu0 0.0
        %463 = vmatpush1.xpose.msra.mxu0 0.0
        %464 = vmatprep.mubr.f32.mxu0 0.0
        %465 = vmatmul.mubr.f32.gmra.mrb[0].mxu0 %v395
        %v466 = vpop.f32.mrb[0].mxu0
        %v467 = vadd.f32 0.0, %v466
        %v468 = vpop.f32.mrb[0].mxu0
        %469 = vdwg.mxu0
        %v470 = vrcp.pop 5.656854
        %v471 = vmul.f32 %v467, %v470
        %v472 = vmul.f32 %v471, 1.442695
        %v473 = vpow.pop %v472
        %v474 = vmul.f32 %v473, %v390
        %vm475 = vcmask 64512
        %v476 = vsel %vm475, %v474, 0.0
        %477 = vadd.xlane.f32.xlu0 %v476
        %v478 = vpop.xlane.xlu0 %477
        %v479 = vadd.f32 %v478, 1e-10
        %v480 = vrcp.pop %v479
        %v481 = vmul.f32 %v474, %v480
        %v482 = vlaneseq
        %v483 = vand.u32 %v482, 127
        %vm484 = vcmp.eq.s32.totalorder %v387, 0
        %v485 = vsel %vm484, %v481, 0.0
        %v486 = vsel %vm475, %v485, 0.0
        %487 = vadd.xlane.f32.xlu0 %v486
        %v488 = vpop.xlane.xlu0 %487
        %vm489 = vcmp.eq.s32.totalorder %v483, 0
        %v490 = vsel %vm489, 1, 0
        %vm491 = vcmp.eq.s32.totalorder %v490, 1
        %v492 = vsel %vm491, %v488, 0.0
        %v493 = vadd.f32 %v492, 0.0
        %vm494 = vcmp.eq.s32.totalorder %v387, 1
        %v495 = vsel %vm494, %v481, 0.0
        %v496 = vsel %vm475, %v495, 0.0
        %497 = vadd.xlane.f32.xlu0 %v496
        %v498 = vpop.xlane.xlu0 %497
        %vm499 = vcmp.eq.s32.totalorder %v483, 1
        %v500 = vsel %vm499, 1, 0
        %vm501 = vcmp.eq.s32.totalorder %v500, 1
        %v502 = vsel %vm501, %v498, 0.0
        %v503 = vadd.f32 %v493, %v502
        %vm504 = vcmp.eq.s32.totalorder %v387, 2
        %v505 = vsel %vm504, %v481, 0.0
        %v506 = vsel %vm475, %v505, 0.0
        %507 = vadd.xlane.f32.xlu0 %v506
        %v508 = vpop.xlane.xlu0 %507
        %vm509 = vcmp.eq.s32.totalorder %v483, 2
        %v510 = vsel %vm509, 1, 0
        %vm511 = vcmp.eq.s32.totalorder %v510, 1
        %v512 = vsel %vm511, %v508, 0.0
        %v513 = vadd.f32 %v503, %v512
        %vm514 = vcmp.eq.s32.totalorder %v387, 3
        %v515 = vsel %vm514, %v481, 0.0
        %v516 = vsel %vm475, %v515, 0.0
        %517 = vadd.xlane.f32.xlu0 %v516
        %v518 = vpop.xlane.xlu0 %517
        %vm519 = vcmp.eq.s32.totalorder %v483, 3
        %v520 = vsel %vm519, 1, 0
        %vm521 = vcmp.eq.s32.totalorder %v520, 1
        %v522 = vsel %vm521, %v518, 0.0
        %v523 = vadd.f32 %v513, %v522
        %vm524 = vcmp.eq.s32.totalorder %v387, 4
        %v525 = vsel %vm524, %v481, 0.0
        %v526 = vsel %vm475, %v525, 0.0
        %527 = vadd.xlane.f32.xlu0 %v526
        %v528 = vpop.xlane.xlu0 %527
        %vm529 = vcmp.eq.s32.totalorder %v483, 4
        %v530 = vsel %vm529, 1, 0
        %vm531 = vcmp.eq.s32.totalorder %v530, 1
        %v532 = vsel %vm531, %v528, 0.0
        %v533 = vadd.f32 %v523, %v532
        %vm534 = vcmp.eq.s32.totalorder %v387, 5
        %v535 = vsel %vm534, %v481, 0.0
        %v536 = vsel %vm475, %v535, 0.0
        %537 = vadd.xlane.f32.xlu0 %v536
        %v538 = vpop.xlane.xlu0 %537
        %vm539 = vcmp.eq.s32.totalorder %v483, 5
        %v540 = vsel %vm539, 1, 0
        %vm541 = vcmp.eq.s32.totalorder %v540, 1
        %v542 = vsel %vm541, %v538, 0.0
        %v543 = vadd.f32 %v533, %v542
        %vm544 = vcmp.eq.s32.totalorder %v387, 6
        %v545 = vsel %vm544, %v481, 0.0
        %v546 = vsel %vm475, %v545, 0.0
        %547 = vadd.xlane.f32.xlu0 %v546
        %v548 = vpop.xlane.xlu0 %547
        %vm549 = vcmp.eq.s32.totalorder %v483, 6
        %v550 = vsel %vm549, 1, 0
        %vm551 = vcmp.eq.s32.totalorder %v550, 1
        %v552 = vsel %vm551, %v548, 0.0
        %v553 = vadd.f32 %v543, %v552
        %vm554 = vcmp.eq.s32.totalorder %v387, 7
        %v555 = vsel %vm554, %v481, 0.0
        %v556 = vsel %vm475, %v555, 0.0
        %557 = vadd.xlane.f32.xlu0 %v556
        %v558 = vpop.xlane.xlu0 %557
        %vm559 = vcmp.eq.s32.totalorder %v483, 7
        %v560 = vsel %vm559, 1, 0
        %vm561 = vcmp.eq.s32.totalorder %v560, 1
        %v562 = vsel %vm561, %v558, 0.0
        %v563 = vadd.f32 %v553, %v562
        %vm564 = vcmp.eq.s32.totalorder %v387, 8
        %v565 = vsel %vm564, %v481, 0.0
        %v566 = vsel %vm475, %v565, 0.0
        %567 = vadd.xlane.f32.xlu0 %v566
        %v568 = vpop.xlane.xlu0 %567
        %vm569 = vcmp.eq.s32.totalorder %v483, 8
        %v570 = vsel %vm569, 1, 0
        %vm571 = vcmp.eq.s32.totalorder %v570, 1
        %v572 = vsel %vm571, %v568, 0.0
        %v573 = vadd.f32 %v563, %v572
        %vm574 = vcmp.eq.s32.totalorder %v387, 9
        %v575 = vsel %vm574, %v481, 0.0
        %v576 = vsel %vm475, %v575, 0.0
        %577 = vadd.xlane.f32.xlu0 %v576
        %v578 = vpop.xlane.xlu0 %577
        %vm579 = vcmp.eq.s32.totalorder %v483, 9
        %v580 = vsel %vm579, 1, 0
        %vm581 = vcmp.eq.s32.totalorder %v580, 1
        %v582 = vsel %vm581, %v578, 0.0
        %v583 = vadd.f32 %v573, %v582
        %vm584 = vcmask 80896
        %v586 = vsel %vm584, %v583, 0
        %vm588 = vcmask 1041408
        %v590 = vsel %vm588, %v392, 0
        %592 = vmatprep.subr.mxu0 0.0
        %593 = vmatpush1.msra.mxu0 %v391
        %594 = vmatprep.subr.mxu0 0.0
        %595 = vmatpush1.msra.mxu0 %v590
        %596 = vmatprep.subr.mxu0 0.0
        %597 = vmatpush1.msra.mxu0 0.0
        %598 = vmatprep.subr.mxu0 0.0
        %599 = vmatpush1.msra.mxu0 0.0
        %600 = vmatprep.subr.mxu0 0.0
        %601 = vmatpush1.msra.mxu0 0.0
        %602 = vmatprep.subr.mxu0 0.0
        %603 = vmatpush1.msra.mxu0 0.0
        %604 = vmatprep.subr.mxu0 0.0
        %605 = vmatpush1.msra.mxu0 0.0
        %606 = vmatprep.subr.mxu0 0.0
        %607 = vmatpush1.msra.mxu0 0.0
        %608 = vmatprep.subr.mxu0 0.0
        %609 = vmatpush1.msra.mxu0 0.0
        %610 = vmatprep.subr.mxu0 0.0
        %611 = vmatpush1.msra.mxu0 0.0
        %612 = vmatprep.subr.mxu0 0.0
        %613 = vmatpush1.msra.mxu0 0.0
        %614 = vmatprep.subr.mxu0 0.0
        %615 = vmatpush1.msra.mxu0 0.0
        %616 = vmatprep.subr.mxu0 0.0
        %617 = vmatpush1.msra.mxu0 0.0
        %618 = vmatprep.subr.mxu0 0.0
        %619 = vmatpush1.msra.mxu0 0.0
        %620 = vmatprep.subr.mxu0 0.0
        %621 = vmatpush1.msra.mxu0 0.0
        %622 = vmatprep.subr.mxu0 0.0
        %623 = vmatpush1.msra.mxu0 0.0
        %624 = vmatprep.subr.mxu0 0.0
        %625 = vmatpush1.msra.mxu0 0.0
        %626 = vmatprep.subr.mxu0 0.0
        %627 = vmatpush1.msra.mxu0 0.0
        %628 = vmatprep.subr.mxu0 0.0
        %629 = vmatpush1.msra.mxu0 0.0
        %630 = vmatprep.subr.mxu0 0.0
        %631 = vmatpush1.msra.mxu0 0.0
        %632 = vmatprep.subr.mxu0 0.0
        %633 = vmatpush1.msra.mxu0 0.0
        %634 = vmatprep.subr.mxu0 0.0
        %635 = vmatpush1.msra.mxu0 0.0
        %636 = vmatprep.subr.mxu0 0.0
        %637 = vmatpush1.msra.mxu0 0.0
        %638 = vmatprep.subr.mxu0 0.0
        %639 = vmatpush1.msra.mxu0 0.0
        %640 = vmatprep.subr.mxu0 0.0
        %641 = vmatpush1.msra.mxu0 0.0
        %642 = vmatprep.subr.mxu0 0.0
        %643 = vmatpush1.msra.mxu0 0.0
        %644 = vmatprep.subr.mxu0 0.0
        %645 = vmatpush1.msra.mxu0 0.0
        %646 = vmatprep.subr.mxu0 0.0
        %647 = vmatpush1.msra.mxu0 0.0
        %648 = vmatprep.subr.mxu0 0.0
        %649 = vmatpush1.msra.mxu0 0.0
        %650 = vmatprep.subr.mxu0 0.0
        %651 = vmatpush1.msra.mxu0 0.0
        %652 = vmatprep.subr.mxu0 0.0
        %653 = vmatpush1.msra.mxu0 0.0
        %654 = vmatprep.subr.mxu0 0.0
        %655 = vmatpush1.msra.mxu0 0.0
        %656 = vmatprep.mubr.f32.mxu0 0.0
        %657 = vmatmul.mubr.f32.gmra.mrb[0].mxu0 %v586
        %v658 = vpop.f32.mrb[0].mxu0
        %v659 = vadd.f32 %v385, %v658
        %v660 = vpop.f32.mrb[0].mxu0
        %661 = vdwg.mxu0
        %662 = vst.msk [vmem:[%s384] sm:$0xff] %vm393, %v659
        %s663 = sand.u32 %s181, 1
        %s664 = scalar_lea.sflag [#allocation4], %s663
        %s665 = sand.u32 %s181, 1
        %s666 = smul.addr %s665, 8
        %s667 = scalar_lea.vmem [#allocation11], %s666
        // Predicated region
        $region61: #{tpu_custom_call.1} parent=39 // pred_check
          %p668 = pneg %p191
        $region62: #{tpu_custom_call.1} parent=39 // pred_check_branch
          %670 = sbr.rel (%p668) target = $region64
        $region63: #{tpu_custom_call.1} parent=39 // pred_region
          %s672 = ssub.s32 128, 128
          %673 = vsyncadd %s664, %s672
          %s674 = sadd.s32 %s33, %s32
          %s675 = smul.addr %s674, 128
          %s676 = scalar_lea.hbm %s5, %s675
          %s678 = sshll.u32 %s667, 4
          %s679 = int_to_ptr.vmem [resolvable:$true] %s678
          %681 = dma.vmem_to_hbm [thread:$0]  %s679, 128, %s676, %s664
        $region64: #{tpu_custom_call.1} parent=39 // pred_fallthru
          _
      $region40: #{tpu_custom_call.1} parent=5 // pred_fallthru
        _
      %p682 = scmp.le.s32.totalorder 2, %s23
      // Predicated region
      $region65: #{tpu_custom_call.1} parent=5 // pred_check
        %p683 = pneg %p682
      $region66: #{tpu_custom_call.1} parent=5 // pred_check_branch
        %685 = sbr.rel (%p683) target = $region68
      $region67: #{tpu_custom_call.1} parent=5 // pred_region
        %s686 = ssub.s32 %s23, 2
        // Predicated region
        $region69: #{tpu_custom_call.1} parent=67 // pred_check
          %p687 = pneg %p197
        $region70: #{tpu_custom_call.1} parent=67 // pred_check_branch
          %689 = sbr.rel (%p687) target = $region72
        $region71: #{tpu_custom_call.1} parent=67 // pred_region
          %s690 = sand.u32 %s182, 1
          %s691 = scalar_lea.sflag [#allocation4], %s690
          %s692 = sand.u32 %s182, 1
          %s693 = smul.addr %s692, 8
          %s694 = scalar_lea.vmem [#allocation11], %s693
          %695 = dma.done %s691, 128
        $region72: #{tpu_custom_call.1} parent=67 // pred_fallthru
          _
      $region68: #{tpu_custom_call.1} parent=5 // pred_fallthru
        _
    $region6: #{tpu_custom_call.1} parent=1 // loop_footer
      %s27 = sadd.s32 1, %s23
    $region7: #{tpu_custom_call.1} parent=1 // loop_footer_branch
      %22 = sbr.rel target = $region3
    $region8: #{tpu_custom_call.1} parent=1 // loop_exit
      _
    %696 = vsyncpa [#allocation3], 1
    %s697 = scalar_lea.sflag [#allocation3], 1
    %698 = vsyncpa %s697, 1
    %699 = vsyncpa [#allocation6], 1
    %s700 = scalar_lea.sflag [#allocation6], 1
    %701 = vsyncpa %s700, 1
    %702 = vsyncpa [#allocation9], 1
    %s703 = scalar_lea.sflag [#allocation9], 1
    %704 = vsyncpa %s703, 1
    %705 = vsyncpa [#allocation4], 1
    %s706 = scalar_lea.sflag [#allocation4], 1
    %707 = vsyncpa %s706, 1

</llo_original>
